<compile_context>
chip_gen: v6e
topology: v6e:2x2x1
jax: 0.10.0
libtpu: 0.0.40
codegen_flags: <defaults>
</compile_context>

<pallas_src>
import math
from functools import partial

import jax
import jax.numpy as jnp
from jax.experimental import pallas as pl
from jax.experimental.pallas import tpu as pltpu


# -----------------------------------------------------------------------------
# Kernel 1: fused QKV projection, tiled over M = B*S rows.
#   x block:   (tm, H)      (pipelined)
#   W_qkv:     (H, 3H)      (VMEM-resident, index_map -> (0, 0))
#   b_qkv:     (1, 3H)      (VMEM-resident)
#   outputs:   q/k/v blocks (tm, H) each  (lane-dense stores)
# -----------------------------------------------------------------------------
def qkv_proj_kernel(x_ref, w_ref, b_ref, q_ref, k_ref, v_ref, *, hidden):
    acc = jnp.dot(x_ref[...], w_ref[...],
                  preferred_element_type=jnp.float32) + b_ref[...]
    q_ref[...] = acc[:, :hidden].astype(q_ref.dtype)
    k_ref[...] = acc[:, hidden:2 * hidden].astype(k_ref.dtype)
    v_ref[...] = acc[:, 2 * hidden:].astype(v_ref.dtype)


# -----------------------------------------------------------------------------
# Kernel 2: attention over a (batch, head-group) block.
#   q/k/v blocks: (1, S, hpb*d) sliced straight out of the [B, S, H] layout.
#   bias block:   (1, S, 1) additive mask bias (per query row, like torch repeat).
#   output block: (1, S, hpb*d) -> single lane-dense store.
# Scale 1/sqrt(d) is already folded into W_q on the host.
# -----------------------------------------------------------------------------
def attention_kernel(bias_ref, q_ref, k_ref, v_ref, o_ref, *,
                     heads_per_block, head_dim):
    hpb, d = heads_per_block, head_dim
    q = q_ref[0]          # [S, hpb*d]
    k = k_ref[0]
    v = v_ref[0]
    bias = bias_ref[0]    # [S, 1], broadcast over the key axis (per-query bias)

    ctx_parts = []
    for h in range(hpb):                       # static, small unrolled loop
        sl = slice(h * d, (h + 1) * d)
        qh, kh, vh = q[:, sl], k[:, sl], v[:, sl]

        # Q @ K^T : contract the head dim of both operands (no explicit .T).
        scores = jax.lax.dot_general(
            qh, kh, (((1,), (1,)), ((), ())),
            preferred_element_type=jnp.float32)            # [S, S]
        scores = scores + bias

        # softmax along the key axis (f32)
        m = jnp.max(scores, axis=-1, keepdims=True)
        e = jnp.exp(scores - m)
        denom = jnp.sum(e, axis=-1, keepdims=True)
        # EUP approximate reciprocal + one Newton step (only S elements), then a
        # VPU multiply instead of an S*S divide.
        r = pl.reciprocal(denom, approx=True)
        r = r * (2.0 - denom * r)
        probs = e * r
        # TODO(synk): attention-probs dropout is identity here (eval mode); a
        # training-mode kernel would draw a mask via pltpu.prng_random_bits.

        ctx_parts.append(jnp.dot(probs.astype(vh.dtype), vh,
                                 preferred_element_type=jnp.float32))

    ctx = ctx_parts[0] if hpb == 1 else jnp.concatenate(ctx_parts, axis=-1)
    o_ref[0] = ctx.astype(o_ref.dtype)         # one lane-dense [S, hpb*d] store


# -----------------------------------------------------------------------------
# Host-side helpers
# -----------------------------------------------------------------------------
def _heads_per_block(num_heads, head_dim):
    """Smallest head group whose lane width (hpb*d) is a 128 multiple and divides
    num_heads; otherwise fall back to all heads (block == full H, always legal)."""
    for cand in range(1, num_heads + 1):
        if (cand * head_dim) % 128 == 0 and num_heads % cand == 0:
            return cand
    return num_heads


def prepare_params(params, num_attention_heads, compute_dtype=jnp.float32):
    """One-time weight prep: transpose torch [out,in] -> [in,out], fuse Q/K/V into
    W_qkv [H, 3H] / b_qkv [3H], fold the 1/sqrt(d) attention scale into W_q/b_q,
    and cast the weights to the matmul compute dtype."""
    H = params["wq"].shape[0]
    d = H // num_attention_heads
    inv = 1.0 / math.sqrt(d)
    w_qkv = jnp.concatenate(
        [params["wq"].T * inv, params["wk"].T, params["wv"].T], axis=1)  # [H, 3H]
    b_qkv = jnp.concatenate([params["bq"] * inv, params["bk"], params["bv"]])
    return {
        "w_qkv": w_qkv.astype(compute_dtype),
        "b_qkv": b_qkv.reshape(1, 3 * H).astype(jnp.float32),  # bias added in f32
    }


# -----------------------------------------------------------------------------
# Wrapper reproducing BertSelfAttention.forward
# -----------------------------------------------------------------------------
def bert_self_attention(hidden_state, prepared, num_attention_heads,
                        attention_mask=None, *,
                        compute_dtype=jnp.float32,
                        qkv_rows_per_block=512,
                        vmem_limit_bytes=None):
    """hidden_state: [B, S, H].  attention_mask (optional): [B, 1, S]
    (1 = keep, 0 = mask), matching the torch view(...+[1]) + repeat semantics
    (the mask indexes the *query* position, as in the original module)."""
    B, S, H = hidden_state.shape
    nh = num_attention_heads
    d = H // nh
    M = B * S

    x2d = hidden_state.reshape(M, H).astype(compute_dtype)
    w_qkv, b_qkv = prepared["w_qkv"], prepared["b_qkv"]

    # ---- fused, tiled QKV projection ----
    tm = M if M <= qkv_rows_per_block else qkv_rows_per_block
    qkv_out = jax.ShapeDtypeStruct((M, H), compute_dtype)
    q2d, k2d, v2d = pl.pallas_call(
        partial(qkv_proj_kernel, hidden=H),
        out_shape=(qkv_out, qkv_out, qkv_out),
        grid_spec=pltpu.PrefetchScalarGridSpec(
            num_scalar_prefetch=0,
            grid=(pl.cdiv(M, tm),),
            in_specs=[
                pl.BlockSpec((tm, H), lambda i: (i, 0)),
                pl.BlockSpec((H, 3 * H), lambda i: (0, 0)),   # resident weights
                pl.BlockSpec((1, 3 * H), lambda i: (0, 0)),   # resident bias
            ],
            out_specs=(
                pl.BlockSpec((tm, H), lambda i: (i, 0)),
                pl.BlockSpec((tm, H), lambda i: (i, 0)),
                pl.BlockSpec((tm, H), lambda i: (i, 0)),
            ),
        ),
        compiler_params=pltpu.CompilerParams(
            dimension_semantics=("parallel",),
            vmem_limit_bytes=vmem_limit_bytes),
    )(x2d, w_qkv, b_qkv)

    # Metadata-only reshapes — heads stay packed in the last dim (no transposes).
    q3 = q2d.reshape(B, S, H)
    k3 = k2d.reshape(B, S, H)
    v3 = v2d.reshape(B, S, H)

    # Tiny additive mask bias [B, S, 1] (per query row), no [B, nh, S, S] tile.
    if attention_mask is not None:
        bias = ((1.0 - attention_mask.astype(jnp.float32)) * -10000.0
                ).reshape(B, S, 1)
    else:
        bias = jnp.zeros((B, S, 1), jnp.float32)

    hpb = _heads_per_block(nh, d)
    n_groups = nh // hpb

    # ---- attention kernel, grid over (batch, head group) ----
    context = pl.pallas_call(
        partial(attention_kernel, heads_per_block=hpb, head_dim=d),
        out_shape=jax.ShapeDtypeStruct((B, S, H), hidden_state.dtype),
        grid_spec=pltpu.PrefetchScalarGridSpec(
            num_scalar_prefetch=0,
            grid=(B, n_groups),
            in_specs=[
                pl.BlockSpec((1, S, 1), lambda b, g: (b, 0, 0)),          # bias
                pl.BlockSpec((1, S, hpb * d), lambda b, g: (b, 0, g)),    # q
                pl.BlockSpec((1, S, hpb * d), lambda b, g: (b, 0, g)),    # k
                pl.BlockSpec((1, S, hpb * d), lambda b, g: (b, 0, g)),    # v
            ],
            out_specs=pl.BlockSpec((1, S, hpb * d), lambda b, g: (b, 0, g)),
        ),
        compiler_params=pltpu.CompilerParams(
            dimension_semantics=("parallel", "parallel")),
    )(bias, q3, k3, v3)

    return context   # already [B, S, H] with heads merged in the last dim


# -----------------------------------------------------------------------------
# Pure-JAX reference (same semantics as the torch module / previous version)
# -----------------------------------------------------------------------------
def bert_self_attention_ref(hidden_state, params, num_attention_heads,
                            attention_mask=None):
    B, S, H = hidden_state.shape
    nh = num_attention_heads
    d = H // nh
    q = hidden_state @ params["wq"].T + params["bq"]
    k = hidden_state @ params["wk"].T + params["bk"]
    v = hidden_state @ params["wv"].T + params["bv"]
    sh = lambda y: y.reshape(B, S, nh, d).transpose(0, 2, 1, 3)
    q, k, v = sh(q), sh(k), sh(v)
    s = jnp.einsum("bhqd,bhkd->bhqk", q, k) / math.sqrt(d)
    if attention_mask is not None:
        m = (1.0 - attention_mask.astype(jnp.float32)) * -10000.0
        s = s + jnp.tile(m[..., None], (1, nh, 1, S))
    p = jax.nn.softmax(s, axis=-1)
    c = jnp.einsum("bhqk,bhkd->bhqd", p, v)
    return c.transpose(0, 2, 1, 3).reshape(B, S, H)


if __name__ == "__main__":
    # Small BertConfig: hidden_size=32, num_attention_heads=4, head_size=8
    B, S, H, NH = 2, 8, 32, 4

    key = jax.random.PRNGKey(0)
    k_x, k_wq, k_wk, k_wv, k_bq, k_bk, k_bv = jax.random.split(key, 7)

    hidden_state = jax.random.normal(k_x, (B, S, H), dtype=jnp.float32)

    scale = 1.0 / math.sqrt(H)
    params = {
        "wq": jax.random.uniform(k_wq, (H, H), jnp.float32, -scale, scale),
        "wk": jax.random.uniform(k_wk, (H, H), jnp.float32, -scale, scale),
        "wv": jax.random.uniform(k_wv, (H, H), jnp.float32, -scale, scale),
        "bq": jax.random.uniform(k_bq, (H,), jnp.float32, -scale, scale),
        "bk": jax.random.uniform(k_bk, (H,), jnp.float32, -scale, scale),
        "bv": jax.random.uniform(k_bv, (H,), jnp.float32, -scale, scale),
    }

    # attention mask [B, 1, S]: mask out the last two positions of batch 1
    attention_mask = jnp.ones((B, 1, S), jnp.float32)
    attention_mask = attention_mask.at[1, 0, -2:].set(0.0)

    ref = bert_self_attention_ref(hidden_state, params, NH, attention_mask)

    # ---- f32 compute path ----
    prepared_f32 = prepare_params(params, NH, jnp.float32)
    out = bert_self_attention(hidden_state, prepared_f32, NH, attention_mask)
    out = jax.block_until_ready(out)
    assert out.shape == (B, S, H)
    assert jnp.allclose(out, ref, atol=1e-3, rtol=1e-3), "f32 mismatch vs ref"

    # ---- bf16 matmul path (f32 accumulation / softmax) ----
    prepared_bf16 = prepare_params(params, NH, jnp.bfloat16)
    out_bf16 = bert_self_attention(hidden_state, prepared_bf16, NH,
                                   attention_mask, compute_dtype=jnp.bfloat16)
    out_bf16 = jax.block_until_ready(out_bf16)
    assert jnp.allclose(out_bf16, ref, atol=5e-2, rtol=5e-2), "bf16 mismatch vs ref"

    print("KERNEL_OK")
</pallas_src>

<mosaic_0001>
module attributes {stable_mosaic.version = 11 : i64} {
  func.func @qkv_proj_kernel(%arg0: i32, %arg1: memref<16x32xf32, #tpu.memory_space<vmem>>, %arg2: memref<32x96xf32, #tpu.memory_space<vmem>>, %arg3: memref<1x96xf32, #tpu.memory_space<vmem>>, %arg4: memref<16x32xf32, #tpu.memory_space<vmem>>, %arg5: memref<16x32xf32, #tpu.memory_space<vmem>>, %arg6: memref<16x32xf32, #tpu.memory_space<vmem>>) attributes {dimension_semantics = [#tpu.dimension_semantics<parallel>], iteration_bounds = array<i64: 1>, scalar_prefetch = 0 : i64, scratch_operands = 0 : i64, tpu.core_type = #tpu.core_type<tc>, window_params = [{transform_indices = @transform_0, window_bounds = array<i64: 16, 32>}, {pipeline_mode = #tpu.pipeline_mode<synchronous>, transform_indices = @transform_1, window_bounds = array<i64: 32, 96>}, {pipeline_mode = #tpu.pipeline_mode<synchronous>, transform_indices = @transform_2, window_bounds = array<i64: 1, 96>}, {transform_indices = @transform_3, window_bounds = array<i64: 16, 32>}, {transform_indices = @transform_4, window_bounds = array<i64: 16, 32>}, {transform_indices = @transform_5, window_bounds = array<i64: 16, 32>}]} {
    %c0 = arith.constant 0 : index
    %c0_0 = arith.constant 0 : index
    %0 = vector.load %arg1[%c0, %c0_0] : memref<16x32xf32, #tpu.memory_space<vmem>>, vector<16x32xf32>
    %c0_1 = arith.constant 0 : index
    %c0_2 = arith.constant 0 : index
    %1 = vector.load %arg2[%c0_1, %c0_2] : memref<32x96xf32, #tpu.memory_space<vmem>>, vector<32x96xf32>
    %cst = arith.constant dense<0.000000e+00> : vector<16x96xf32>
    %2 = tpu.matmul %0, %1, %cst {dimension_numbers = #tpu.dot_dimension_numbers<[1], [0], [0], [1], [0, 0, 1, 1], [], []>} : vector<16x32xf32>, vector<32x96xf32>, vector<16x96xf32> -> vector<16x96xf32>
    %c0_3 = arith.constant 0 : index
    %c0_4 = arith.constant 0 : index
    %3 = vector.load %arg3[%c0_3, %c0_4] : memref<1x96xf32, #tpu.memory_space<vmem>>, vector<1x96xf32>
    %4 = vector.broadcast %3 : vector<1x96xf32> to vector<16x96xf32>
    %5 = arith.addf %2, %4 : vector<16x96xf32>
    %6 = vector.extract_strided_slice %5 {offsets = [0, 0], sizes = [16, 32], strides = [1, 1]} : vector<16x96xf32> to vector<16x32xf32>
    %c0_5 = arith.constant 0 : index
    %c0_6 = arith.constant 0 : index
    %7 = vector.load %arg4[%c0_5, %c0_6] : memref<16x32xf32, #tpu.memory_space<vmem>>, vector<16x32xf32>
    tpu.vector_store %arg4[%c0_5, %c0_6], %6 {strides = array<i32>} : memref<16x32xf32, #tpu.memory_space<vmem>>, vector<16x32xf32>,
    %8 = vector.extract_strided_slice %5 {offsets = [0, 32], sizes = [16, 32], strides = [1, 1]} : vector<16x96xf32> to vector<16x32xf32>
    %c0_7 = arith.constant 0 : index
    %c0_8 = arith.constant 0 : index
    %9 = vector.load %arg5[%c0_7, %c0_8] : memref<16x32xf32, #tpu.memory_space<vmem>>, vector<16x32xf32>
    tpu.vector_store %arg5[%c0_7, %c0_8], %8 {strides = array<i32>} : memref<16x32xf32, #tpu.memory_space<vmem>>, vector<16x32xf32>,
    %10 = vector.extract_strided_slice %5 {offsets = [0, 64], sizes = [16, 32], strides = [1, 1]} : vector<16x96xf32> to vector<16x32xf32>
    %c0_9 = arith.constant 0 : index
    %c0_10 = arith.constant 0 : index
    %11 = vector.load %arg6[%c0_9, %c0_10] : memref<16x32xf32, #tpu.memory_space<vmem>>, vector<16x32xf32>
    tpu.vector_store %arg6[%c0_9, %c0_10], %10 {strides = array<i32>} : memref<16x32xf32, #tpu.memory_space<vmem>>, vector<16x32xf32>,
    return
  }
  func.func @transform_0(%arg0: i32) -> (i32, i32) {
    %c0_i32 = arith.constant 0 : i32
    %c0_i32_0 = arith.constant 0 : i32
    return %arg0, %c0_i32 : i32, i32
  }
  func.func @transform_1(%arg0: i32) -> (i32, i32) {
    %c0_i32 = arith.constant 0 : i32
    %c0_i32_0 = arith.constant 0 : i32
    %c0_i32_1 = arith.constant 0 : i32
    return %c0_i32, %c0_i32_0 : i32, i32
  }
  func.func @transform_2(%arg0: i32) -> (i32, i32) {
    %c0_i32 = arith.constant 0 : i32
    %c0_i32_0 = arith.constant 0 : i32
    %c0_i32_1 = arith.constant 0 : i32
    return %c0_i32, %c0_i32_0 : i32, i32
  }
  func.func @transform_3(%arg0: i32) -> (i32, i32) {
    %c0_i32 = arith.constant 0 : i32
    %c0_i32_0 = arith.constant 0 : i32
    return %arg0, %c0_i32 : i32, i32
  }
  func.func @transform_4(%arg0: i32) -> (i32, i32) {
    %c0_i32 = arith.constant 0 : i32
    %c0_i32_0 = arith.constant 0 : i32
    return %arg0, %c0_i32 : i32, i32
  }
  func.func @transform_5(%arg0: i32) -> (i32, i32) {
    %c0_i32 = arith.constant 0 : i32
    %c0_i32_0 = arith.constant 0 : i32
    return %arg0, %c0_i32 : i32, i32
  }
}

</mosaic_0001>

<llo_original>
// kernel: tpu_custom_call.1
$region0: #{tpu_custom_call.1}
  #allocation0 [shape = 'u32[]', space=smem, size = 0x4, offset = 0x4, fixed_abs, tag = 'smem constant byte address 0x4 - core index']
  #allocation1 [shape = 'u32[144,128]{1,0:T(1,128)}', space=vmem, size = 0x12000, scoped, tag = 'internal scratch']
  %s0 = inlined_call_operand.hbm [shape: f32[16,32], index: 0, kind: input, shape index: {}]
  %s1 = inlined_call_operand.hbm [shape: f32[32,96], index: 1, kind: input, shape index: {}]
  %s2 = inlined_call_operand.vmem [shape: f32[1,96], index: 2, kind: input, shape index: {}]
  %s3 = inlined_call_operand.hbm [shape: f32[16,32], index: 3, kind: output, shape index: {0}]
  %s4 = inlined_call_operand.hbm [shape: f32[16,32], index: 4, kind: output, shape index: {1}]
  %s5 = inlined_call_operand.hbm [shape: f32[16,32], index: 5, kind: output, shape index: {2}]
  %6 = xla_tuple %s3, %s4, %s5
  %s7 = sld [smem:[#allocation0]]
  $region46: #{tpu_custom_call.1} parent=0
    _
  %s9 = ssub.s32 1, %s7
  %s10 = scalar_select 0, %s9, %s7
  $region1: #{tpu_custom_call.1} parent=0
    #allocation2 [shape = 'u8[8192]{0}', space=vmem, size = 0x2000, scoped, tag = 'input window, operand 0, single buffered']
    #allocation3 [shape = 's32[1]{0}', space=sflag, size = 0x4, scoped, tag = 'scoped memory for tpu_custom_call.1']
    #allocation4 [shape = 's32[1]{0}', space=sflag, size = 0x4, scoped, tag = 'scoped memory for tpu_custom_call.1']
    #allocation5 [shape = 'u8[16384]{0}', space=vmem, size = 0x4000, scoped, tag = 'input window, operand 1, single buffered']
    #allocation6 [shape = 's32[1]{0}', space=sflag, size = 0x4, scoped, tag = 'scoped memory for tpu_custom_call.1']
    #allocation7 [shape = 'u8[8192]{0}', space=vmem, size = 0x2000, scoped, tag = 'output window, operand 0, single buffered']
    #allocation8 [shape = 'u8[8192]{0}', space=vmem, size = 0x2000, scoped, tag = 'output window, operand 1, single buffered']
    #allocation9 [shape = 's32[1]{0}', space=sflag, size = 0x4, scoped, tag = 'scoped memory for tpu_custom_call.1']
    #allocation10 [shape = 'u8[8192]{0}', space=vmem, size = 0x2000, scoped, tag = 'output window, operand 2, single buffered']
    %11 = vsyncpa [#allocation3], 0
    %12 = vsyncpa [#allocation6], 0
    %13 = vsyncpa [#allocation4], 0
    %14 = vsyncpa [#allocation9], 0
    // Predicated region
    $region2: #{tpu_custom_call.1} parent=1 // pred_check
      _
    $region3: #{tpu_custom_call.1} parent=1 // pred_check_branch
      %16 = sbr.rel (0) target = $region5
    $region4: #{tpu_custom_call.1} parent=1 // pred_region
      %s18 = ssub.s32 256, 256
      %19 = vsyncadd [#allocation3], %s18
      %s20 = sshll.u32 [#allocation2], 4
      %s21 = int_to_ptr.vmem [resolvable:$true] %s20
      %26 = dma.hbm_to_vmem [thread:$0]  %s0, 256, %s21, [#allocation3], 128, 128, 8
    $region5: #{tpu_custom_call.1} parent=1 // pred_fallthru
      _
    // Predicated region
    $region6: #{tpu_custom_call.1} parent=1 // pred_check
      _
    $region7: #{tpu_custom_call.1} parent=1 // pred_check_branch
      %28 = sbr.rel (0) target = $region9
    $region8: #{tpu_custom_call.1} parent=1 // pred_region
      %s30 = ssub.s32 512, 512
      %31 = vsyncadd [#allocation6], %s30
      %s32 = sshll.u32 [#allocation5], 4
      %s33 = int_to_ptr.vmem [resolvable:$true] %s32
      %38 = dma.hbm_to_vmem [thread:$0]  %s1, 512, %s33, [#allocation6], 128, 128, 8
    $region9: #{tpu_custom_call.1} parent=1 // pred_fallthru
      _
    // Predicated region
    $region10: #{tpu_custom_call.1} parent=1 // pred_check
      _
    $region11: #{tpu_custom_call.1} parent=1 // pred_check_branch
      %40 = sbr.rel (0) target = $region13
    $region12: #{tpu_custom_call.1} parent=1 // pred_region
      _
    $region13: #{tpu_custom_call.1} parent=1 // pred_fallthru
      _
    // Predicated region
    $region14: #{tpu_custom_call.1} parent=1 // pred_check
      _
    $region15: #{tpu_custom_call.1} parent=1 // pred_check_branch
      %42 = sbr.rel (0) target = $region17
    $region16: #{tpu_custom_call.1} parent=1 // pred_region
      %43 = dma.done [#allocation3], 256
    $region17: #{tpu_custom_call.1} parent=1 // pred_fallthru
      _
    // Predicated region
    $region18: #{tpu_custom_call.1} parent=1 // pred_check
      _
    $region19: #{tpu_custom_call.1} parent=1 // pred_check_branch
      %45 = sbr.rel (0) target = $region21
    $region20: #{tpu_custom_call.1} parent=1 // pred_region
      %46 = dma.done [#allocation6], 512
    $region21: #{tpu_custom_call.1} parent=1 // pred_fallthru
      _
    %v47 = vld [vmem:[#allocation2] sm:$0xff]
    %v48 = vld [vmem:[#allocation2 + $0x8] sm:$0xff]
    %v49 = vld [vmem:[#allocation5] sm:$0xff]
    %v50 = vld [vmem:[#allocation5 + $0x8] sm:$0xff]
    %v51 = vld [vmem:[#allocation5 + $0x10] sm:$0xff]
    %v52 = vld [vmem:[#allocation5 + $0x18] sm:$0xff]
    %v53 = vld [vmem:[%s2] sm:$0x1]
    %v55 = vlaneseq
    %v56 = vshrl.u32 %v55, 7
    %v57 = vsub.s32 0, %v56
    %v58 = vrot.slane %v53, %v57
    %vm60 = vcmask 261120
    %v62 = vsel %vm60, %v47, 0
    %v65 = vsel %vm60, %v48, 0
    %67 = vmatprep.subr.mxu0 0.0
    %68 = vmatpush1.msra.mxu0 0.0
    %69 = vmatprep.subr.mxu0 0.0
    %70 = vmatpush1.msra.mxu0 0.0
    %71 = vmatprep.subr.mxu0 0.0
    %72 = vmatpush1.msra.mxu0 0.0
    %73 = vmatprep.subr.mxu0 0.0
    %74 = vmatpush1.msra.mxu0 0.0
    %75 = vmatprep.subr.mxu0 0.0
    %76 = vmatpush1.msra.mxu0 0.0
    %77 = vmatprep.subr.mxu0 0.0
    %78 = vmatpush1.msra.mxu0 0.0
    %79 = vmatprep.subr.mxu0 0.0
    %80 = vmatpush1.msra.mxu0 0.0
    %81 = vmatprep.subr.mxu0 0.0
    %82 = vmatpush1.msra.mxu0 0.0
    %83 = vmatprep.subr.mxu0 0.0
    %84 = vmatpush1.msra.mxu0 0.0
    %85 = vmatprep.subr.mxu0 0.0
    %86 = vmatpush1.msra.mxu0 0.0
    %87 = vmatprep.subr.mxu0 0.0
    %88 = vmatpush1.msra.mxu0 0.0
    %89 = vmatprep.subr.mxu0 0.0
    %90 = vmatpush1.msra.mxu0 0.0
    %91 = vmatprep.subr.mxu0 0.0
    %92 = vmatpush1.msra.mxu0 %v52
    %93 = vmatprep.subr.mxu0 0.0
    %94 = vmatpush1.msra.mxu0 %v51
    %95 = vmatprep.subr.mxu0 0.0
    %96 = vmatpush1.msra.mxu0 %v50
    %97 = vmatprep.subr.mxu0 0.0
    %98 = vmatpush1.msra.mxu0 %v49
    %99 = vmatprep.subr.mxu0 0.0
    %100 = vmatpush2.msra.mxu0 0.0
    %101 = vmatprep.subr.mxu0 0.0
    %102 = vmatpush2.msra.mxu0 0.0
    %103 = vmatprep.subr.mxu0 0.0
    %104 = vmatpush2.msra.mxu0 0.0
    %105 = vmatprep.subr.mxu0 0.0
    %106 = vmatpush2.msra.mxu0 0.0
    %107 = vmatprep.subr.mxu0 0.0
    %108 = vmatpush2.msra.mxu0 0.0
    %109 = vmatprep.subr.mxu0 0.0
    %110 = vmatpush2.msra.mxu0 0.0
    %111 = vmatprep.subr.mxu0 0.0
    %112 = vmatpush2.msra.mxu0 0.0
    %113 = vmatprep.subr.mxu0 0.0
    %114 = vmatpush2.msra.mxu0 0.0
    %115 = vmatprep.subr.mxu0 0.0
    %116 = vmatpush2.msra.mxu0 0.0
    %117 = vmatprep.subr.mxu0 0.0
    %118 = vmatpush2.msra.mxu0 0.0
    %119 = vmatprep.subr.mxu0 0.0
    %120 = vmatpush2.msra.mxu0 0.0
    %121 = vmatprep.subr.mxu0 0.0
    %122 = vmatpush2.msra.mxu0 0.0
    %123 = vmatprep.subr.mxu0 0.0
    %124 = vmatpush2.msra.mxu0 0.0
    %125 = vmatprep.subr.mxu0 0.0
    %126 = vmatpush2.msra.mxu0 0.0
    %127 = vmatprep.subr.mxu0 0.0
    %128 = vmatpush2.msra.mxu0 0.0
    %129 = vmatprep.subr.mxu0 0.0
    %130 = vmatpush2.msra.mxu0 0.0
    %131 = vmatprep.mubr.f32.mxu0 0.0
    %132 = vmatmul.mubr.f32.gmra.mxu0 %v62
    %v133 = vpop.f32.mrf.mxu0
    %v134 = vadd.f32 %v58, %v133
    %v135 = vpop.f32.mrf.mxu0
    %136 = vmatprep.mubr.f32.mxu0 0.0
    %137 = vmatmul.mubr.f32.gmra.mxu0 %v65
    %v138 = vpop.f32.mrf.mxu0
    %v139 = vadd.f32 %v58, %v138
    %v140 = vpop.f32.mrf.mxu0
    %141 = vdwg.mxu0
    %142 = vst.msk [vmem:[#allocation7] sm:$0xff] %vm60, %v134
    %143 = vst.msk [vmem:[#allocation7 + $0x8] sm:$0xff] %vm60, %v139
    %146 = vrot.lane.b32.xlu0 %v134, 96
    %v147 = vpop.permute.xlu0 %146
    %148 = vrot.lane.b32.xlu0 %v139, 96
    %v149 = vpop.permute.xlu0 %148
    %152 = vst.msk [vmem:[#allocation8] sm:$0xff] %vm60, %v147
    %153 = vst.msk [vmem:[#allocation8 + $0x8] sm:$0xff] %vm60, %v149
    %154 = vrot.lane.b32.xlu0 %v134, 64
    %v155 = vpop.permute.xlu0 %154
    %156 = vrot.lane.b32.xlu0 %v139, 64
    %v157 = vpop.permute.xlu0 %156
    %160 = vst.msk [vmem:[#allocation10] sm:$0xff] %vm60, %v155
    %161 = vst.msk [vmem:[#allocation10 + $0x8] sm:$0xff] %vm60, %v157
    // Predicated region
    $region22: #{tpu_custom_call.1} parent=1 // pred_check
      _
    $region23: #{tpu_custom_call.1} parent=1 // pred_check_branch
      %163 = sbr.rel (0) target = $region25
    $region24: #{tpu_custom_call.1} parent=1 // pred_region
      %s165 = ssub.s32 256, 256
      %166 = vsyncadd [#allocation4], %s165
      %s167 = sshll.u32 [#allocation7], 4
      %s168 = int_to_ptr.vmem [resolvable:$true] %s167
      %173 = dma.vmem_to_hbm [thread:$0]  %s168, 256, %s3, [#allocation4], 128, 128, 8
    $region25: #{tpu_custom_call.1} parent=1 // pred_fallthru
      _
    // Predicated region
    $region26: #{tpu_custom_call.1} parent=1 // pred_check
      _
    $region27: #{tpu_custom_call.1} parent=1 // pred_check_branch
      %175 = sbr.rel (0) target = $region29
    $region28: #{tpu_custom_call.1} parent=1 // pred_region
      %s177 = ssub.s32 256, 256
      %178 = vsyncadd [#allocation9], %s177
      %s179 = sshll.u32 [#allocation8], 4
      %s180 = int_to_ptr.vmem [resolvable:$true] %s179
      %185 = dma.vmem_to_hbm [thread:$0]  %s180, 256, %s4, [#allocation9], 128, 128, 8
    $region29: #{tpu_custom_call.1} parent=1 // pred_fallthru
      _
    // Predicated region
    $region30: #{tpu_custom_call.1} parent=1 // pred_check
      _
    $region31: #{tpu_custom_call.1} parent=1 // pred_check_branch
      %187 = sbr.rel (0) target = $region33
    $region32: #{tpu_custom_call.1} parent=1 // pred_region
      %s189 = ssub.s32 256, 256
      %190 = vsyncadd [#allocation9], %s189
      %s191 = sshll.u32 [#allocation10], 4
      %s192 = int_to_ptr.vmem [resolvable:$true] %s191
      %197 = dma.vmem_to_hbm [thread:$0]  %s192, 256, %s5, [#allocation9], 128, 128, 8
    $region33: #{tpu_custom_call.1} parent=1 // pred_fallthru
      _
    // Predicated region
    $region34: #{tpu_custom_call.1} parent=1 // pred_check
      _
    $region35: #{tpu_custom_call.1} parent=1 // pred_check_branch
      %199 = sbr.rel (0) target = $region37
    $region36: #{tpu_custom_call.1} parent=1 // pred_region
      %200 = dma.done [#allocation4], 256
    $region37: #{tpu_custom_call.1} parent=1 // pred_fallthru
      _
    // Predicated region
    $region38: #{tpu_custom_call.1} parent=1 // pred_check
      _
    $region39: #{tpu_custom_call.1} parent=1 // pred_check_branch
      %202 = sbr.rel (0) target = $region41
    $region40: #{tpu_custom_call.1} parent=1 // pred_region
      %203 = dma.done [#allocation9], 256
    $region41: #{tpu_custom_call.1} parent=1 // pred_fallthru
      _
    // Predicated region
    $region42: #{tpu_custom_call.1} parent=1 // pred_check
      _
    $region43: #{tpu_custom_call.1} parent=1 // pred_check_branch
      %205 = sbr.rel (0) target = $region45
    $region44: #{tpu_custom_call.1} parent=1 // pred_region
      %206 = dma.done [#allocation9], 256
    $region45: #{tpu_custom_call.1} parent=1 // pred_fallthru
      _
    %207 = vsyncpa [#allocation3], 1
    %208 = vsyncpa [#allocation6], 1
    %209 = vsyncpa [#allocation4], 1
    %210 = vsyncpa [#allocation9], 1

</llo_original>
